<compile_context>
chip_gen: v5e
topology: v5e:2x2
jax: 0.10.0
libtpu: 0.0.40
codegen_flags: <defaults>
</compile_context>

<pallas_src>
import functools

import jax
import jax.numpy as jnp
from jax.experimental import pallas as pl
from jax.experimental.pallas import tpu as pltpu


def _round_up(v: int, m: int) -> int:
    return ((v + m - 1) // m) * m


def _param_spec(shape):
    """Constant-index BlockSpec for VMEM-resident parameters (single-buffered:
    the block index never changes, so double-buffering would only duplicate the
    parameter in VMEM)."""
    try:
        return pl.BlockSpec(
            shape, lambda i: (0,) * len(shape), pipeline_mode=pl.Buffered(1)
        )
    except TypeError:  # older BlockSpec signature without pipeline_mode
        return pl.BlockSpec(shape, lambda i: (0,) * len(shape))


def _make_mlp_kernel(num_layers: int, compute_dtype):
    """Fused MLP kernel.

    Ref order: x, W_0..W_{L-1}, bias_stack, out.
    ReLU after every layer except the last (matches the nn.Sequential in MLP).
    Matmuls run in `compute_dtype` with f32 accumulation; bias add stays f32;
    inter-layer activations are carried in `compute_dtype`.
    """

    def kernel(*refs):
        x_ref = refs[0]
        w_refs = refs[1 : 1 + num_layers]
        b_ref = refs[1 + num_layers]            # (L, W_max) f32
        out_ref = refs[2 + num_layers]          # (1, 1, tb) f32

        h = x_ref[...]                          # (tb, f), already compute_dtype
        acc = None
        for li in range(num_layers):            # Python-unrolled layer loop
            w = w_refs[li][...]                 # (in_p, out_p) compute_dtype
            out_w = w.shape[1]
            b = b_ref[li : li + 1, :out_w]      # (1, out_p) f32, static slice
            acc = jnp.dot(h, w, preferred_element_type=jnp.float32) + b
            if li < num_layers - 1:
                # ReLU, then keep the activation in compute dtype (value-identical
                # to relu-then-cast at the next matmul input).
                h = jnp.maximum(acc, 0.0).astype(compute_dtype)

        # acc: (tb, o_pad) f32; only column 0 is the logical output.
        # Pack it lane-densely across the rows of this tile: (1, tb).
        packed = jnp.transpose(acc)[0:1, :]
        out_ref[...] = packed[None].astype(out_ref.dtype)   # (1, 1, tb)

    return kernel


@functools.partial(jax.jit, static_argnames=("out_features", "block_rows"))
def mlp_forward(x, weights, bias_stack, *, out_features=1, block_rows=512):
    """Fused MLP forward.

    x: (N, F).  weights: tuple of lane-padded (in, out) arrays from pad_mlp_params
    (out widths are multiples of 128; layer-0 K is left at the logical width).
    bias_stack: (L, W_max) f32.  Returns (N, out_features) f32.
    """
    weights = tuple(weights)
    num_layers = len(weights)
    assert out_features == 1, "MLP module hard-codes output_size = 1"

    n, f = x.shape
    assert weights[0].shape[0] == f, "layer-0 weight K must match x features"
    compute_dtype = weights[0].dtype

    # Batch tile: big (amortizes per-step overhead, fills the MXU M dim) and a
    # multiple of 128 so the lane-packed output transpose is well-formed.
    n8 = _round_up(max(n, 1), 8)
    tb = _round_up(min(block_rows, n8), 128)
    n_pad = _round_up(n8, tb)
    num_tiles = n_pad // tb

    # Only row padding; feature dim stays logical.  Cast to compute dtype here so
    # the x-tile DMA is half-width and the kernel needs no input cast.
    x_c = x.astype(compute_dtype)
    if n_pad != n:
        x_c = jnp.zeros((n_pad, f), compute_dtype).at[:n, :].set(x_c)

    in_specs = [pl.BlockSpec((tb, f), lambda i: (i, 0))]
    # Weights / biases: constant block index -> DMA'd once, VMEM-resident, 1-buffered.
    # TODO(synk): add a layer-axis weight-streaming path (pltpu.emit_pipeline) when
    # resident params exceed ~half of per-core VMEM (matters on v7x's 64 MiB per TC).
    in_specs += [_param_spec(w.shape) for w in weights]
    in_specs += [_param_spec(bias_stack.shape)]
    out_spec = pl.BlockSpec((1, 1, tb), lambda i: (i, 0, 0))

    kernel = _make_mlp_kernel(num_layers, compute_dtype)

    # Advisory cost estimate for XLA's scheduler.
    flops = 2 * n_pad * sum(w.shape[0] * w.shape[1] for w in weights)
    param_bytes = sum(w.size * w.dtype.itemsize for w in weights) + bias_stack.size * 4
    bytes_accessed = x_c.size * x_c.dtype.itemsize + param_bytes + n_pad * 4

    # VMEM budget: params single-buffered + double-buffered x/out tiles + a few f32
    # activation slabs of the widest layer.  Cap at 80% of this generation's VMEM.
    max_w = max([f] + [w.shape[1] for w in weights])
    tile_bytes = tb * f * x_c.dtype.itemsize + tb * 4
    act_bytes = 6 * tb * max_w * 4
    est = param_bytes + 2 * tile_bytes + act_bytes
    try:
        vmem_cap = int(
            getattr(pltpu.get_tpu_info(), "vmem_capacity_bytes", 64 * 1024 * 1024)
        )
    except Exception:  # conservative fallback (valid on every generation)
        vmem_cap = 64 * 1024 * 1024
    vmem_limit = int(
        min(int(0.8 * vmem_cap), max(16 * 1024 * 1024, int(1.5 * est)))
    )

    out_packed = pl.pallas_call(
        kernel,
        grid=(num_tiles,),
        in_specs=in_specs,
        out_specs=out_spec,
        out_shape=jax.ShapeDtypeStruct((num_tiles, 1, tb), jnp.float32),
        compiler_params=pltpu.CompilerParams(
            dimension_semantics=("parallel",),
            vmem_limit_bytes=vmem_limit,
        ),
        cost_estimate=pl.CostEstimate(
            flops=flops, transcendentals=0, bytes_accessed=bytes_accessed
        ),
    )(x_c, *weights, bias_stack)

    # (num_tiles, 1, tb) row-major == global row order; unpack to (N, 1).
    return out_packed.reshape(n_pad, 1)[:n, :out_features]


def init_mlp_params(key, input_size, hidden_dim, num_hidden_layers, output_size=1):
    """Deterministic init mimicking torch.nn.Linear default U(-1/sqrt(fan_in), +).

    Returns logical (unpadded) f32 params; weights stored as (in, out) = W.T."""
    dims = [input_size] + [hidden_dim] * num_hidden_layers + [output_size]
    weights, biases = [], []
    for i in range(len(dims) - 1):
        fan_in, fan_out = dims[i], dims[i + 1]
        key, wk, bk = jax.random.split(key, 3)
        bound = 1.0 / (fan_in ** 0.5)
        w = jax.random.uniform(
            wk, (fan_in, fan_out), jnp.float32, minval=-bound, maxval=bound
        )
        b = jax.random.uniform(
            bk, (1, fan_out), jnp.float32, minval=-bound, maxval=bound
        )
        weights.append(w)
        biases.append(b)
    return weights, biases


def pad_mlp_params(weights, biases, *, matmul_dtype=jnp.bfloat16):
    """Prepare kernel parameters (done once, not per call):
      * layer-0 weight keeps its logical K (no zero-column DMA for narrow inputs),
      * every out width is zero-padded to a multiple of 128 lanes,
      * later layers' K matches the previous layer's padded out width,
      * weights are stored in the MXU compute dtype; biases stacked into one f32
        (L, W_max) array."""
    num_layers = len(weights)
    out_pads = [_round_up(w.shape[1], 128) for w in weights]
    padded_w = []
    for li, w in enumerate(weights):
        fi, fo = w.shape
        in_pad = fi if li == 0 else out_pads[li - 1]
        wp = (
            jnp.zeros((in_pad, out_pads[li]), jnp.float32)
            .at[:fi, :fo]
            .set(w)
            .astype(matmul_dtype)
        )
        padded_w.append(wp)
    w_max = max(out_pads)
    bias_stack = jnp.zeros((num_layers, w_max), jnp.float32)
    for li, b in enumerate(biases):
        fo = b.shape[-1]
        bias_stack = bias_stack.at[li, :fo].set(b.reshape(fo))
    return tuple(padded_w), bias_stack


def mlp_reference(x, weights, biases, compute_dtype=jnp.float32):
    """Pure-JAX reference on logical (unpadded) params; mirrors the kernel's
    cast-to-compute_dtype matmuls with f32 accumulation."""
    h = x.astype(jnp.float32)
    n = len(weights)
    for i, (w, b) in enumerate(zip(weights, biases)):
        h = (
            jnp.dot(
                h.astype(compute_dtype),
                w.astype(compute_dtype),
                preferred_element_type=jnp.float32,
            )
            + b
        )
        if i < n - 1:
            h = jnp.maximum(h, 0.0)
    return h


if __name__ == "__main__":
    # Small shapes consistent with MLP.forward on a 2-D (rows, features) input:
    #   input_size = number of dataframe columns = 4, hidden_dim = 32,
    #   num_hidden_layers = 2, output_size = 1, batch rows = 8.
    batch, input_size, hidden_dim, num_hidden_layers, output_size = 8, 4, 32, 2, 1

    key = jax.random.PRNGKey(0)
    key, xk = jax.random.split(key)
    x = jax.random.normal(xk, (batch, input_size), dtype=jnp.float32)
    weights, biases = init_mlp_params(
        key, input_size, hidden_dim, num_hidden_layers, output_size
    )

    # --- f32 MXU path: validation against the original torch-f32 semantics ---
    w_f32, b_f32 = pad_mlp_params(weights, biases, matmul_dtype=jnp.float32)
    out_f32 = jax.block_until_ready(
        mlp_forward(x, w_f32, b_f32, out_features=output_size)
    )
    ref_f32 = mlp_reference(x, weights, biases, compute_dtype=jnp.float32)
    assert out_f32.shape == (batch, output_size), out_f32.shape
    err = float(jnp.max(jnp.abs(out_f32 - ref_f32)))
    assert err < 2e-2, f"f32 mismatch: max abs err = {err:e}"

    # --- bf16 MXU inputs + f32 accumulation: production path ---
    w_bf16, b_bf16 = pad_mlp_params(weights, biases, matmul_dtype=jnp.bfloat16)
    out_bf16 = jax.block_until_ready(
        mlp_forward(x, w_bf16, b_bf16, out_features=output_size)
    )
    ref_bf16 = mlp_reference(x, weights, biases, compute_dtype=jnp.bfloat16)
    assert out_bf16.shape == (batch, output_size), out_bf16.shape
    err = float(jnp.max(jnp.abs(out_bf16 - ref_bf16)))
    assert err < 2e-3, f"bf16 mismatch vs bf16 reference: max abs err = {err:e}"
    assert jnp.allclose(out_bf16, ref_f32, atol=1e-1, rtol=1e-1), (
        "bf16 path drifted from f32 reference: max abs err = %e"
        % float(jnp.max(jnp.abs(out_bf16 - ref_f32)))
    )

    # --- larger, un-aligned batch to exercise multi-tile grid + row padding ---
    batch2, in2, hid2, layers2 = 300, 6, 96, 3
    key, xk2, pk2 = jax.random.split(key, 3)
    x2 = jax.random.normal(xk2, (batch2, in2), dtype=jnp.float32)
    w2, bz2 = init_mlp_params(pk2, in2, hid2, layers2, output_size)
    w2_p, b2_p = pad_mlp_params(w2, bz2, matmul_dtype=jnp.bfloat16)
    out2 = jax.block_until_ready(
        mlp_forward(x2, w2_p, b2_p, out_features=output_size, block_rows=128)
    )
    ref2 = mlp_reference(x2, w2, bz2, compute_dtype=jnp.bfloat16)
    assert out2.shape == (batch2, output_size), out2.shape
    err = float(jnp.max(jnp.abs(out2 - ref2)))
    assert err < 3e-3, f"tiled bf16 mismatch: max abs err = {err:e}"

    print("KERNEL_OK")
</pallas_src>

<mosaic_0001>
module attributes {stable_mosaic.version = 11 : i64} {
  func.func @kernel(%arg0: i32, %arg1: memref<128x4xf32, #tpu.memory_space<vmem>>, %arg2: memref<4x128xf32, #tpu.memory_space<vmem>>, %arg3: memref<128x128xf32, #tpu.memory_space<vmem>>, %arg4: memref<128x128xf32, #tpu.memory_space<vmem>>, %arg5: memref<3x128xf32, #tpu.memory_space<vmem>>, %arg6: memref<1x1x128xf32, #tpu.memory_space<vmem>>) attributes {dimension_semantics = [#tpu.dimension_semantics<parallel>], iteration_bounds = array<i64: 1>, scalar_prefetch = 0 : i64, scratch_operands = 0 : i64, tpu.core_type = #tpu.core_type<tc>, window_params = [{transform_indices = @transform_0, window_bounds = array<i64: 128, 4>}, {pipeline_mode = #tpu.pipeline_mode<synchronous>, transform_indices = @transform_1, window_bounds = array<i64: 4, 128>}, {pipeline_mode = #tpu.pipeline_mode<synchronous>, transform_indices = @transform_2, window_bounds = array<i64: 128, 128>}, {pipeline_mode = #tpu.pipeline_mode<synchronous>, transform_indices = @transform_3, window_bounds = array<i64: 128, 128>}, {pipeline_mode = #tpu.pipeline_mode<synchronous>, transform_indices = @transform_4, window_bounds = array<i64: 3, 128>}, {transform_indices = @transform_5, window_bounds = array<i64: 1, 1, 128>}]} {
    %c0 = arith.constant 0 : index
    %c0_0 = arith.constant 0 : index
    %0 = vector.load %arg1[%c0, %c0_0] : memref<128x4xf32, #tpu.memory_space<vmem>>, vector<128x4xf32>
    %c0_1 = arith.constant 0 : index
    %c0_2 = arith.constant 0 : index
    %1 = vector.load %arg2[%c0_1, %c0_2] : memref<4x128xf32, #tpu.memory_space<vmem>>, vector<4x128xf32>
    %c0_3 = arith.constant 0 : index
    %c0_4 = arith.constant 0 : index
    %2 = vector.load %arg5[%c0_3, %c0_4] : memref<3x128xf32, #tpu.memory_space<vmem>>, vector<1x128xf32>
    %cst = arith.constant dense<0.000000e+00> : vector<128x128xf32>
    %3 = tpu.matmul %0, %1, %cst {dimension_numbers = #tpu.dot_dimension_numbers<[1], [0], [0], [1], [0, 0, 1, 1], [], []>} : vector<128x4xf32>, vector<4x128xf32>, vector<128x128xf32> -> vector<128x128xf32>
    %4 = vector.broadcast %2 : vector<1x128xf32> to vector<128x128xf32>
    %5 = arith.addf %3, %4 : vector<128x128xf32>
    %cst_5 = arith.constant 0.000000e+00 : f32
    %6 = vector.broadcast %cst_5 : f32 to vector<128x128xf32>
    %7 = arith.maximumf %5, %6 : vector<128x128xf32>
    %c0_6 = arith.constant 0 : index
    %c0_7 = arith.constant 0 : index
    %8 = vector.load %arg3[%c0_6, %c0_7] : memref<128x128xf32, #tpu.memory_space<vmem>>, vector<128x128xf32>
    %c1 = arith.constant 1 : index
    %c0_8 = arith.constant 0 : index
    %9 = vector.load %arg5[%c1, %c0_8] : memref<3x128xf32, #tpu.memory_space<vmem>>, vector<1x128xf32>
    %cst_9 = arith.constant dense<0.000000e+00> : vector<128x128xf32>
    %10 = tpu.matmul %7, %8, %cst_9 {dimension_numbers = #tpu.dot_dimension_numbers<[1], [0], [0], [1], [0, 0, 1, 1], [], []>} : vector<128x128xf32>, vector<128x128xf32>, vector<128x128xf32> -> vector<128x128xf32>
    %11 = vector.broadcast %9 : vector<1x128xf32> to vector<128x128xf32>
    %12 = arith.addf %10, %11 : vector<128x128xf32>
    %cst_10 = arith.constant 0.000000e+00 : f32
    %13 = vector.broadcast %cst_10 : f32 to vector<128x128xf32>
    %14 = arith.maximumf %12, %13 : vector<128x128xf32>
    %c0_11 = arith.constant 0 : index
    %c0_12 = arith.constant 0 : index
    %15 = vector.load %arg4[%c0_11, %c0_12] : memref<128x128xf32, #tpu.memory_space<vmem>>, vector<128x128xf32>
    %c2 = arith.constant 2 : index
    %c0_13 = arith.constant 0 : index
    %16 = vector.load %arg5[%c2, %c0_13] : memref<3x128xf32, #tpu.memory_space<vmem>>, vector<1x128xf32>
    %cst_14 = arith.constant dense<0.000000e+00> : vector<128x128xf32>
    %17 = tpu.matmul %14, %15, %cst_14 {dimension_numbers = #tpu.dot_dimension_numbers<[1], [0], [0], [1], [0, 0, 1, 1], [], []>} : vector<128x128xf32>, vector<128x128xf32>, vector<128x128xf32> -> vector<128x128xf32>
    %18 = vector.broadcast %16 : vector<1x128xf32> to vector<128x128xf32>
    %19 = arith.addf %17, %18 : vector<128x128xf32>
    %20 = tpu.transpose %19, [1, 0] : vector<128x128xf32> -> vector<128x128xf32>
    %21 = vector.extract_strided_slice %20 {offsets = [0, 0], sizes = [1, 128], strides = [1, 1]} : vector<128x128xf32> to vector<1x128xf32>
    %22 = vector.shape_cast %21 : vector<1x128xf32> to vector<1x1x128xf32>
    %c0_15 = arith.constant 0 : index
    %c0_16 = arith.constant 0 : index
    %c0_17 = arith.constant 0 : index
    %23 = vector.load %arg6[%c0_15, %c0_16, %c0_17] : memref<1x1x128xf32, #tpu.memory_space<vmem>>, vector<1x1x128xf32>
    tpu.vector_store %arg6[%c0_15, %c0_16, %c0_17], %22 {strides = array<i32>} : memref<1x1x128xf32, #tpu.memory_space<vmem>>, vector<1x1x128xf32>,
    return
  }
  func.func @transform_0(%arg0: i32) -> (i32, i32) {
    %c0_i32 = arith.constant 0 : i32
    %c0_i32_0 = arith.constant 0 : i32
    return %arg0, %c0_i32 : i32, i32
  }
  func.func @transform_1(%arg0: i32) -> (i32, i32) {
    %c0_i32 = arith.constant 0 : i32
    %c0_i32_0 = arith.constant 0 : i32
    %c0_i32_1 = arith.constant 0 : i32
    return %c0_i32, %c0_i32_0 : i32, i32
  }
  func.func @transform_2(%arg0: i32) -> (i32, i32) {
    %c0_i32 = arith.constant 0 : i32
    %c0_i32_0 = arith.constant 0 : i32
    %c0_i32_1 = arith.constant 0 : i32
    return %c0_i32, %c0_i32_0 : i32, i32
  }
  func.func @transform_3(%arg0: i32) -> (i32, i32) {
    %c0_i32 = arith.constant 0 : i32
    %c0_i32_0 = arith.constant 0 : i32
    %c0_i32_1 = arith.constant 0 : i32
    return %c0_i32, %c0_i32_0 : i32, i32
  }
  func.func @transform_4(%arg0: i32) -> (i32, i32) {
    %c0_i32 = arith.constant 0 : i32
    %c0_i32_0 = arith.constant 0 : i32
    %c0_i32_1 = arith.constant 0 : i32
    return %c0_i32, %c0_i32_0 : i32, i32
  }
  func.func @transform_5(%arg0: i32) -> (i32, i32, i32) {
    %c0_i32 = arith.constant 0 : i32
    %c0_i32_0 = arith.constant 0 : i32
    %c0_i32_1 = arith.constant 0 : i32
    return %arg0, %c0_i32, %c0_i32_0 : i32, i32, i32
  }
}

</mosaic_0001>

<llo_original>
// kernel: mlp_forward.1
$region0: #{mlp_forward.1}
  #allocation0 [shape = 'u32[]', space=smem, size = 0x4, offset = 0x4, fixed_abs, tag = 'smem constant byte address 0x4 - core index']
  #allocation1 [shape = 'u32[72,128]{1,0:T(1,128)}', space=vmem, size = 0x9000, scoped, tag = 'internal scratch']
  %s0 = inlined_call_operand.vmem [shape: f32[128,4], index: 0, kind: input, shape index: {}]
  %s1 = inlined_call_operand.vmem [shape: f32[4,128], index: 1, kind: input, shape index: {}]
  %s2 = inlined_call_operand.vmem [shape: f32[128,128], index: 2, kind: input, shape index: {}]
  %s3 = inlined_call_operand.hbm [shape: f32[128,128], index: 3, kind: input, shape index: {}]
  %s4 = inlined_call_operand.vmem [shape: f32[3,128], index: 4, kind: input, shape index: {}]
  %s5 = inlined_call_operand.vmem [shape: f32[1,1,128], index: 5, kind: output, shape index: {}]
  %s6 = sld [smem:[#allocation0]]
  $region34: #{mlp_forward.1} parent=0
    _
  %s8 = ssub.s32 1, %s6
  %s9 = scalar_select 0, %s8, %s6
  $region1: #{mlp_forward.1} parent=0
    #allocation2 [shape = 'u8[65536]{0}', space=vmem, size = 0x10000, scoped, tag = 'input window, operand 3, single buffered']
    #allocation3 [shape = 's32[1]{0}', space=sflag, size = 0x4, scoped, tag = 'scoped memory for mlp_forward.1']
    %10 = vsyncpa [#allocation3], 0
    // Predicated region
    $region2: #{mlp_forward.1} parent=1 // pred_check
      _
    $region3: #{mlp_forward.1} parent=1 // pred_check_branch
      %12 = sbr.rel (0) target = $region5
    $region4: #{mlp_forward.1} parent=1 // pred_region
      _
    $region5: #{mlp_forward.1} parent=1 // pred_fallthru
      _
    // Predicated region
    $region6: #{mlp_forward.1} parent=1 // pred_check
      _
    $region7: #{mlp_forward.1} parent=1 // pred_check_branch
      %14 = sbr.rel (0) target = $region9
    $region8: #{mlp_forward.1} parent=1 // pred_region
      _
    $region9: #{mlp_forward.1} parent=1 // pred_fallthru
      _
    // Predicated region
    $region10: #{mlp_forward.1} parent=1 // pred_check
      _
    $region11: #{mlp_forward.1} parent=1 // pred_check_branch
      %16 = sbr.rel (0) target = $region13
    $region12: #{mlp_forward.1} parent=1 // pred_region
      _
    $region13: #{mlp_forward.1} parent=1 // pred_fallthru
      _
    // Predicated region
    $region14: #{mlp_forward.1} parent=1 // pred_check
      _
    $region15: #{mlp_forward.1} parent=1 // pred_check_branch
      %18 = sbr.rel (0) target = $region17
    $region16: #{mlp_forward.1} parent=1 // pred_region
      %20 = vsyncadd [#allocation3], 0
      %s21 = sshll.u32 %s3, 4
      %s22 = int_to_ptr.hbm [resolvable:$true] %s21
      %s23 = sshll.u32 [#allocation2], 4
      %s24 = int_to_ptr.vmem [resolvable:$true] %s23
      %29 = dma.hbm_to_vmem [thread:$0]  %s22, 2048, %s24, [#allocation3], 128, 128, 8
    $region17: #{mlp_forward.1} parent=1 // pred_fallthru
      _
    // Predicated region
    $region18: #{mlp_forward.1} parent=1 // pred_check
      _
    $region19: #{mlp_forward.1} parent=1 // pred_check_branch
      %31 = sbr.rel (0) target = $region21
    $region20: #{mlp_forward.1} parent=1 // pred_region
      _
    $region21: #{mlp_forward.1} parent=1 // pred_fallthru
      _
    // Predicated region
    $region22: #{mlp_forward.1} parent=1 // pred_check
      _
    $region23: #{mlp_forward.1} parent=1 // pred_check_branch
      %33 = sbr.rel (0) target = $region25
    $region24: #{mlp_forward.1} parent=1 // pred_region
      %35 = dma.done [#allocation3], 2048
    $region25: #{mlp_forward.1} parent=1 // pred_fallthru
      _
    %v36 = vld [vmem:[%s0] sm:$0xff]
    %v37 = vld [vmem:[%s0 + $0x8] sm:$0xff]
    %v38 = vld [vmem:[%s0 + $0x10] sm:$0xff]
    %v39 = vld [vmem:[%s0 + $0x18] sm:$0xff]
    %v40 = vld [vmem:[%s0 + $0x20] sm:$0xff]
    %v41 = vld [vmem:[%s0 + $0x28] sm:$0xff]
    %v42 = vld [vmem:[%s0 + $0x30] sm:$0xff]
    %v43 = vld [vmem:[%s0 + $0x38] sm:$0xff]
    %v44 = vld [vmem:[%s0 + $0x40] sm:$0xff]
    %v45 = vld [vmem:[%s0 + $0x48] sm:$0xff]
    %v46 = vld [vmem:[%s0 + $0x50] sm:$0xff]
    %v47 = vld [vmem:[%s0 + $0x58] sm:$0xff]
    %v48 = vld [vmem:[%s0 + $0x60] sm:$0xff]
    %v49 = vld [vmem:[%s0 + $0x68] sm:$0xff]
    %v50 = vld [vmem:[%s0 + $0x70] sm:$0xff]
    %v51 = vld [vmem:[%s0 + $0x78] sm:$0xff]
    %v52 = vld [vmem:[%s1] sm:$0xf]
    %v53 = vld [vmem:[%s4] sm:$0x1]
    %v54 = vperm.slane %v53, 0
    %vm55 = vcmask 31744
    %v57 = vsel %vm55, %v36, 0
    %v60 = vsel %vm55, %v37, 0
    %v63 = vsel %vm55, %v38, 0
    %v66 = vsel %vm55, %v39, 0
    %v69 = vsel %vm55, %v40, 0
    %v72 = vsel %vm55, %v41, 0
    %v75 = vsel %vm55, %v42, 0
    %v78 = vsel %vm55, %v43, 0
    %v81 = vsel %vm55, %v44, 0
    %v84 = vsel %vm55, %v45, 0
    %v87 = vsel %vm55, %v46, 0
    %v90 = vsel %vm55, %v47, 0
    %v93 = vsel %vm55, %v48, 0
    %v96 = vsel %vm55, %v49, 0
    %v99 = vsel %vm55, %v50, 0
    %v102 = vsel %vm55, %v51, 0
    %vm104 = vcmask 1043456
    %v106 = vsel %vm104, %v52, 0
    %108 = vmatpush.msra.mxu0 0.0
    %109 = vmatpush.msra.mxu0 0.0
    %110 = vmatpush.msra.mxu0 0.0
    %111 = vmatpush.msra.mxu0 0.0
    %112 = vmatpush.msra.mxu0 0.0
    %113 = vmatpush.msra.mxu0 0.0
    %114 = vmatpush.msra.mxu0 0.0
    %115 = vmatpush.msra.mxu0 0.0
    %116 = vmatpush.msra.mxu0 0.0
    %117 = vmatpush.msra.mxu0 0.0
    %118 = vmatpush.msra.mxu0 0.0
    %119 = vmatpush.msra.mxu0 0.0
    %120 = vmatpush.msra.mxu0 0.0
    %121 = vmatpush.msra.mxu0 0.0
    %122 = vmatpush.msra.mxu0 0.0
    %123 = vmatpush.msra.mxu0 %v106
    %124 = vmatmul.f32.gmra.mxu0 %v57
    %v125 = vpop.f32.mrf.mxu0
    %v126 = vadd.f32 %v54, %v125
    %127 = vmatmul.f32.gmra.mxu0 %v60
    %v128 = vpop.f32.mrf.mxu0
    %v129 = vadd.f32 %v54, %v128
    %130 = vmatmul.f32.gmra.mxu0 %v63
    %v131 = vpop.f32.mrf.mxu0
    %v132 = vadd.f32 %v54, %v131
    %133 = vmatmul.f32.gmra.mxu0 %v66
    %v134 = vpop.f32.mrf.mxu0
    %v135 = vadd.f32 %v54, %v134
    %136 = vmatmul.f32.gmra.mxu0 %v69
    %v137 = vpop.f32.mrf.mxu0
    %v138 = vadd.f32 %v54, %v137
    %139 = vmatmul.f32.gmra.mxu0 %v72
    %v140 = vpop.f32.mrf.mxu0
    %v141 = vadd.f32 %v54, %v140
    %142 = vmatmul.f32.gmra.mxu0 %v75
    %v143 = vpop.f32.mrf.mxu0
    %v144 = vadd.f32 %v54, %v143
    %145 = vmatmul.f32.gmra.mxu0 %v78
    %v146 = vpop.f32.mrf.mxu0
    %v147 = vadd.f32 %v54, %v146
    %148 = vmatmul.f32.gmra.mxu0 %v81
    %v149 = vpop.f32.mrf.mxu0
    %v150 = vadd.f32 %v54, %v149
    %151 = vmatmul.f32.gmra.mxu0 %v84
    %v152 = vpop.f32.mrf.mxu0
    %v153 = vadd.f32 %v54, %v152
    %154 = vmatmul.f32.gmra.mxu0 %v87
    %v155 = vpop.f32.mrf.mxu0
    %v156 = vadd.f32 %v54, %v155
    %157 = vmatmul.f32.gmra.mxu0 %v90
    %v158 = vpop.f32.mrf.mxu0
    %v159 = vadd.f32 %v54, %v158
    %160 = vmatmul.f32.gmra.mxu0 %v93
    %v161 = vpop.f32.mrf.mxu0
    %v162 = vadd.f32 %v54, %v161
    %163 = vmatmul.f32.gmra.mxu0 %v96
    %v164 = vpop.f32.mrf.mxu0
    %v165 = vadd.f32 %v54, %v164
    %166 = vmatmul.f32.gmra.mxu0 %v99
    %v167 = vpop.f32.mrf.mxu0
    %v168 = vadd.f32 %v54, %v167
    %169 = vmatmul.f32.gmra.mxu0 %v102
    %v170 = vpop.f32.mrf.mxu0
    %v171 = vadd.f32 %v54, %v170
    %172 = vdwg.mxu0
    %v173 = vmax.f32 %v126, 0.0
    %v174 = vmax.f32 %v129, 0.0
    %v175 = vmax.f32 %v132, 0.0
    %v176 = vmax.f32 %v135, 0.0
    %v177 = vmax.f32 %v138, 0.0
    %v178 = vmax.f32 %v141, 0.0
    %v179 = vmax.f32 %v144, 0.0
    %v180 = vmax.f32 %v147, 0.0
    %v181 = vmax.f32 %v150, 0.0
    %v182 = vmax.f32 %v153, 0.0
    %v183 = vmax.f32 %v156, 0.0
    %v184 = vmax.f32 %v159, 0.0
    %v185 = vmax.f32 %v162, 0.0
    %v186 = vmax.f32 %v165, 0.0
    %v187 = vmax.f32 %v168, 0.0
    %v188 = vmax.f32 %v171, 0.0
    %v189 = vld [vmem:[%s2] sm:$0xff]
    %v190 = vld [vmem:[%s2 + $0x8] sm:$0xff]
    %v191 = vld [vmem:[%s2 + $0x10] sm:$0xff]
    %v192 = vld [vmem:[%s2 + $0x18] sm:$0xff]
    %v193 = vld [vmem:[%s2 + $0x20] sm:$0xff]
    %v194 = vld [vmem:[%s2 + $0x28] sm:$0xff]
    %v195 = vld [vmem:[%s2 + $0x30] sm:$0xff]
    %v196 = vld [vmem:[%s2 + $0x38] sm:$0xff]
    %v197 = vld [vmem:[%s2 + $0x40] sm:$0xff]
    %v198 = vld [vmem:[%s2 + $0x48] sm:$0xff]
    %v199 = vld [vmem:[%s2 + $0x50] sm:$0xff]
    %v200 = vld [vmem:[%s2 + $0x58] sm:$0xff]
    %v201 = vld [vmem:[%s2 + $0x60] sm:$0xff]
    %v202 = vld [vmem:[%s2 + $0x68] sm:$0xff]
    %v203 = vld [vmem:[%s2 + $0x70] sm:$0xff]
    %v204 = vld [vmem:[%s2 + $0x78] sm:$0xff]
    %v205 = vld [vmem:[%s4 + $0x1] sm:$0x1]
    %v206 = vperm.slane %v205, 0
    %207 = vmatpush.msra.mxu0 %v204
    %208 = vmatpush.msra.mxu0 %v203
    %209 = vmatpush.msra.mxu0 %v202
    %210 = vmatpush.msra.mxu0 %v201
    %211 = vmatpush.msra.mxu0 %v200
    %212 = vmatpush.msra.mxu0 %v199
    %213 = vmatpush.msra.mxu0 %v198
    %214 = vmatpush.msra.mxu0 %v197
    %215 = vmatpush.msra.mxu0 %v196
    %216 = vmatpush.msra.mxu0 %v195
    %217 = vmatpush.msra.mxu0 %v194
    %218 = vmatpush.msra.mxu0 %v193
    %219 = vmatpush.msra.mxu0 %v192
    %220 = vmatpush.msra.mxu0 %v191
    %221 = vmatpush.msra.mxu0 %v190
    %222 = vmatpush.msra.mxu0 %v189
    %223 = vmatmul.f32.gmra.mxu0 %v173
    %v224 = vpop.f32.mrf.mxu0
    %v225 = vadd.f32 %v206, %v224
    %226 = vmatmul.f32.gmra.mxu0 %v174
    %v227 = vpop.f32.mrf.mxu0
    %v228 = vadd.f32 %v206, %v227
    %229 = vmatmul.f32.gmra.mxu0 %v175
    %v230 = vpop.f32.mrf.mxu0
    %v231 = vadd.f32 %v206, %v230
    %232 = vmatmul.f32.gmra.mxu0 %v176
    %v233 = vpop.f32.mrf.mxu0
    %v234 = vadd.f32 %v206, %v233
    %235 = vmatmul.f32.gmra.mxu0 %v177
    %v236 = vpop.f32.mrf.mxu0
    %v237 = vadd.f32 %v206, %v236
    %238 = vmatmul.f32.gmra.mxu0 %v178
    %v239 = vpop.f32.mrf.mxu0
    %v240 = vadd.f32 %v206, %v239
    %241 = vmatmul.f32.gmra.mxu0 %v179
    %v242 = vpop.f32.mrf.mxu0
    %v243 = vadd.f32 %v206, %v242
    %244 = vmatmul.f32.gmra.mxu0 %v180
    %v245 = vpop.f32.mrf.mxu0
    %v246 = vadd.f32 %v206, %v245
    %247 = vmatmul.f32.gmra.mxu0 %v181
    %v248 = vpop.f32.mrf.mxu0
    %v249 = vadd.f32 %v206, %v248
    %250 = vmatmul.f32.gmra.mxu0 %v182
    %v251 = vpop.f32.mrf.mxu0
    %v252 = vadd.f32 %v206, %v251
    %253 = vmatmul.f32.gmra.mxu0 %v183
    %v254 = vpop.f32.mrf.mxu0
    %v255 = vadd.f32 %v206, %v254
    %256 = vmatmul.f32.gmra.mxu0 %v184
    %v257 = vpop.f32.mrf.mxu0
    %v258 = vadd.f32 %v206, %v257
    %259 = vmatmul.f32.gmra.mxu0 %v185
    %v260 = vpop.f32.mrf.mxu0
    %v261 = vadd.f32 %v206, %v260
    %262 = vmatmul.f32.gmra.mxu0 %v186
    %v263 = vpop.f32.mrf.mxu0
    %v264 = vadd.f32 %v206, %v263
    %265 = vmatmul.f32.gmra.mxu0 %v187
    %v266 = vpop.f32.mrf.mxu0
    %v267 = vadd.f32 %v206, %v266
    %268 = vmatmul.f32.gmra.mxu0 %v188
    %v269 = vpop.f32.mrf.mxu0
    %v270 = vadd.f32 %v206, %v269
    %271 = vdwg.mxu0
    %v272 = vmax.f32 %v225, 0.0
    %v273 = vmax.f32 %v228, 0.0
    %v274 = vmax.f32 %v231, 0.0
    %v275 = vmax.f32 %v234, 0.0
    %v276 = vmax.f32 %v237, 0.0
    %v277 = vmax.f32 %v240, 0.0
    %v278 = vmax.f32 %v243, 0.0
    %v279 = vmax.f32 %v246, 0.0
    %v280 = vmax.f32 %v249, 0.0
    %v281 = vmax.f32 %v252, 0.0
    %v282 = vmax.f32 %v255, 0.0
    %v283 = vmax.f32 %v258, 0.0
    %v284 = vmax.f32 %v261, 0.0
    %v285 = vmax.f32 %v264, 0.0
    %v286 = vmax.f32 %v267, 0.0
    %v287 = vmax.f32 %v270, 0.0
    %v288 = vld [vmem:[#allocation2] sm:$0xff]
    %v289 = vld [vmem:[#allocation2 + $0x8] sm:$0xff]
    %v290 = vld [vmem:[#allocation2 + $0x10] sm:$0xff]
    %v291 = vld [vmem:[#allocation2 + $0x18] sm:$0xff]
    %v292 = vld [vmem:[#allocation2 + $0x20] sm:$0xff]
    %v293 = vld [vmem:[#allocation2 + $0x28] sm:$0xff]
    %v294 = vld [vmem:[#allocation2 + $0x30] sm:$0xff]
    %v295 = vld [vmem:[#allocation2 + $0x38] sm:$0xff]
    %v296 = vld [vmem:[#allocation2 + $0x40] sm:$0xff]
    %v297 = vld [vmem:[#allocation2 + $0x48] sm:$0xff]
    %v298 = vld [vmem:[#allocation2 + $0x50] sm:$0xff]
    %v299 = vld [vmem:[#allocation2 + $0x58] sm:$0xff]
    %v300 = vld [vmem:[#allocation2 + $0x60] sm:$0xff]
    %v301 = vld [vmem:[#allocation2 + $0x68] sm:$0xff]
    %v302 = vld [vmem:[#allocation2 + $0x70] sm:$0xff]
    %v303 = vld [vmem:[#allocation2 + $0x78] sm:$0xff]
    %v304 = vld [vmem:[%s4 + $0x2] sm:$0x1]
    %v305 = vperm.slane %v304, 0
    %306 = vmatpush.msra.mxu0 %v303
    %307 = vmatpush.msra.mxu0 %v302
    %308 = vmatpush.msra.mxu0 %v301
    %309 = vmatpush.msra.mxu0 %v300
    %310 = vmatpush.msra.mxu0 %v299
    %311 = vmatpush.msra.mxu0 %v298
    %312 = vmatpush.msra.mxu0 %v297
    %313 = vmatpush.msra.mxu0 %v296
    %314 = vmatpush.msra.mxu0 %v295
    %315 = vmatpush.msra.mxu0 %v294
    %316 = vmatpush.msra.mxu0 %v293
    %317 = vmatpush.msra.mxu0 %v292
    %318 = vmatpush.msra.mxu0 %v291
    %319 = vmatpush.msra.mxu0 %v290
    %320 = vmatpush.msra.mxu0 %v289
    %321 = vmatpush.msra.mxu0 %v288
    %322 = vmatmul.f32.gmra.mxu0 %v272
    %v323 = vpop.f32.mrf.mxu0
    %v324 = vadd.f32 %v305, %v323
    %325 = vmatmul.f32.gmra.mxu0 %v273
    %v326 = vpop.f32.mrf.mxu0
    %v327 = vadd.f32 %v305, %v326
    %328 = vmatmul.f32.gmra.mxu0 %v274
    %v329 = vpop.f32.mrf.mxu0
    %v330 = vadd.f32 %v305, %v329
    %331 = vmatmul.f32.gmra.mxu0 %v275
    %v332 = vpop.f32.mrf.mxu0
    %v333 = vadd.f32 %v305, %v332
    %334 = vmatmul.f32.gmra.mxu0 %v276
    %v335 = vpop.f32.mrf.mxu0
    %v336 = vadd.f32 %v305, %v335
    %337 = vmatmul.f32.gmra.mxu0 %v277
    %v338 = vpop.f32.mrf.mxu0
    %v339 = vadd.f32 %v305, %v338
    %340 = vmatmul.f32.gmra.mxu0 %v278
    %v341 = vpop.f32.mrf.mxu0
    %v342 = vadd.f32 %v305, %v341
    %343 = vmatmul.f32.gmra.mxu0 %v279
    %v344 = vpop.f32.mrf.mxu0
    %v345 = vadd.f32 %v305, %v344
    %346 = vmatmul.f32.gmra.mxu0 %v280
    %v347 = vpop.f32.mrf.mxu0
    %v348 = vadd.f32 %v305, %v347
    %349 = vmatmul.f32.gmra.mxu0 %v281
    %v350 = vpop.f32.mrf.mxu0
    %v351 = vadd.f32 %v305, %v350
    %352 = vmatmul.f32.gmra.mxu0 %v282
    %v353 = vpop.f32.mrf.mxu0
    %v354 = vadd.f32 %v305, %v353
    %355 = vmatmul.f32.gmra.mxu0 %v283
    %v356 = vpop.f32.mrf.mxu0
    %v357 = vadd.f32 %v305, %v356
    %358 = vmatmul.f32.gmra.mxu0 %v284
    %v359 = vpop.f32.mrf.mxu0
    %v360 = vadd.f32 %v305, %v359
    %361 = vmatmul.f32.gmra.mxu0 %v285
    %v362 = vpop.f32.mrf.mxu0
    %v363 = vadd.f32 %v305, %v362
    %364 = vmatmul.f32.gmra.mxu0 %v286
    %v365 = vpop.f32.mrf.mxu0
    %v366 = vadd.f32 %v305, %v365
    %367 = vmatmul.f32.gmra.mxu0 %v287
    %v368 = vpop.f32.mrf.mxu0
    %v369 = vadd.f32 %v305, %v368
    %370 = vdwg.mxu0
    %371 = vxpose.xlu0.b32.start [1/16] %v324, 128
    %372 = vxpose.xlu0.b32.cont [2/16] %v327, 128
    %373 = vxpose.xlu0.b32.cont [3/16] %v330, 128
    %374 = vxpose.xlu0.b32.cont [4/16] %v333, 128
    %375 = vxpose.xlu0.b32.cont [5/16] %v336, 128
    %376 = vxpose.xlu0.b32.cont [6/16] %v339, 128
    %377 = vxpose.xlu0.b32.cont [7/16] %v342, 128
    %378 = vxpose.xlu0.b32.cont [8/16] %v345, 128
    %379 = vxpose.xlu0.b32.cont [9/16] %v348, 128
    %380 = vxpose.xlu0.b32.cont [10/16] %v351, 128
    %381 = vxpose.xlu0.b32.cont [11/16] %v354, 128
    %382 = vxpose.xlu0.b32.cont [12/16] %v357, 128
    %383 = vxpose.xlu0.b32.cont [13/16] %v360, 128
    %384 = vxpose.xlu0.b32.cont [14/16] %v363, 128
    %385 = vxpose.xlu0.b32.cont [15/16] %v366, 128
    %386 = vxpose.xlu0.b32.end [16/16] %v369, 128
    %v387 = vpop.trf.xlu0
    %v388 = vpop.trf.xlu0
    %v389 = vpop.trf.xlu0
    %v390 = vpop.trf.xlu0
    %v391 = vpop.trf.xlu0
    %v392 = vpop.trf.xlu0
    %v393 = vpop.trf.xlu0
    %v394 = vpop.trf.xlu0
    %v395 = vpop.trf.xlu0
    %v396 = vpop.trf.xlu0
    %v397 = vpop.trf.xlu0
    %v398 = vpop.trf.xlu0
    %v399 = vpop.trf.xlu0
    %v400 = vpop.trf.xlu0
    %v401 = vpop.trf.xlu0
    %v402 = vpop.trf.xlu0
    %403 = vst [vmem:[%s5] sm:$0x1] %v387
    // Predicated region
    $region26: #{mlp_forward.1} parent=1 // pred_check
      _
    $region27: #{mlp_forward.1} parent=1 // pred_check_branch
      %405 = sbr.rel (0) target = $region29
    $region28: #{mlp_forward.1} parent=1 // pred_region
      _
    $region29: #{mlp_forward.1} parent=1 // pred_fallthru
      _
    // Predicated region
    $region30: #{mlp_forward.1} parent=1 // pred_check
      _
    $region31: #{mlp_forward.1} parent=1 // pred_check_branch
      %407 = sbr.rel (0) target = $region33
    $region32: #{mlp_forward.1} parent=1 // pred_region
      _
    $region33: #{mlp_forward.1} parent=1 // pred_fallthru
      _
    %408 = vsyncpa [#allocation3], 1

</llo_original>
